<compile_context>
chip_gen: v5e
topology: v5e:2x2
jax: 0.10.0
libtpu: 0.0.40
codegen_flags: <defaults>
</compile_context>

<pallas_src>
import warnings

import jax
import jax.numpy as jnp
from jax.experimental import pallas as pl
from jax.experimental.pallas import tpu as pltpu


# ---------------------------------------------------------------------------
# Aliased (zero-copy) identity: the output buffer IS the input buffer.
# ---------------------------------------------------------------------------
def _alias_kernel(x_hbm, o_hbm):
    # Output aliases the input (same HBM buffer): nothing to compute or move.
    del x_hbm, o_hbm


def _identity_alias(x: jax.Array) -> jax.Array:
    return pl.pallas_call(
        _alias_kernel,
        out_shape=jax.ShapeDtypeStruct(x.shape, x.dtype),
        in_specs=[pl.BlockSpec(memory_space=pl.ANY)],
        out_specs=pl.BlockSpec(memory_space=pl.ANY),
        input_output_aliases={0: 0},
    )(x)


# ---------------------------------------------------------------------------
# Materialized copy: direct HBM -> HBM async DMA(s), no VMEM bounce, no grid.
# ---------------------------------------------------------------------------
def _make_copy_kernel(chunk_starts, chunk_sizes, leading):
    """Copy the input HBM ref to the output HBM ref with one async DMA per
    (static) chunk along the leading axis."""

    def kernel(x_hbm, o_hbm, sem):
        descs = []
        for c, (start, size) in enumerate(zip(chunk_starts, chunk_sizes)):
            if start == 0 and size == leading:
                src, dst = x_hbm, o_hbm          # single full-array DMA
            else:
                src = x_hbm.at[pl.ds(start, size)]
                dst = o_hbm.at[pl.ds(start, size)]
            cp = pltpu.make_async_copy(src, dst, sem.at[c])
            cp.start()
            descs.append(cp)
        for cp in descs:                          # wait on all outstanding DMAs
            cp.wait()

    return kernel


def _device_kind() -> str:
    try:
        return jax.devices()[0].device_kind.lower()
    except Exception:
        return ""


def _chunk_plan(total_bytes: int, leading: int):
    """Bytes-based, generation-aware chunking along the leading axis."""
    kind = _device_kind()
    if "v7" in kind:        # ~3.2 TB/s HBM: more concurrent streams help
        target, max_chunks = 32 << 20, 8
    elif "v5" in kind:      # ~820 GB/s: one descriptor already saturates HBM
        target, max_chunks = 64 << 20, 2
    else:                   # v6e / unknown
        target, max_chunks = 32 << 20, 4
    n = (total_bytes + target - 1) // target
    n = int(max(1, min(n, max_chunks, leading)))
    base, rem = divmod(leading, n)
    sizes = tuple(base + (1 if c < rem else 0) for c in range(n))
    starts = tuple(sum(sizes[:c]) for c in range(n))
    return starts, sizes


def _identity_copy(x: jax.Array) -> jax.Array:
    leading = x.shape[0]
    total_bytes = x.size * jnp.dtype(x.dtype).itemsize
    starts, sizes = _chunk_plan(total_bytes, leading)
    kernel = _make_copy_kernel(starts, sizes, leading)
    return pl.pallas_call(
        kernel,
        out_shape=jax.ShapeDtypeStruct(x.shape, x.dtype),
        in_specs=[pl.BlockSpec(memory_space=pl.ANY)],
        out_specs=pl.BlockSpec(memory_space=pl.ANY),
        scratch_shapes=[pltpu.SemaphoreType.DMA((len(sizes),))],
    )(x)


# ---------------------------------------------------------------------------
# Public wrapper: Identity.forward(x) == x
# ---------------------------------------------------------------------------
def identity(x: jax.Array, *, materialize: bool = False,
             skip_below_bytes: int = 64 << 10) -> jax.Array:
    """Pallas implementation of Identity.forward(x) == x.

    Default path aliases the output to the input (zero HBM traffic in-kernel;
    pair with jit donate_argnums to make it truly free).  Set materialize=True
    to force a fresh buffer via direct HBM->HBM DMA.
    """
    x = jnp.asarray(x)
    if x.ndim == 0 or x.size == 0:
        return x                                  # nothing worth a kernel launch
    total_bytes = x.size * jnp.dtype(x.dtype).itemsize
    if total_bytes < skip_below_bytes:
        return x                                  # launch overhead >> copy time
    if materialize:
        return _identity_copy(x)
    return _identity_alias(x)


if __name__ == "__main__":
    key = jax.random.PRNGKey(0)
    # Small NCHW input consistent with a typical conv-net feature map.
    x = jax.random.normal(key, (2, 4, 16, 16), dtype=jnp.float32)

    # Default path for small inputs: no kernel launch at all.
    y0 = identity(x)
    jax.block_until_ready(y0)
    assert y0.shape == x.shape and y0.dtype == x.dtype
    assert bool(jnp.all(y0 == x))

    # Force the aliased (zero-copy) Pallas kernel to run on the demo input.
    y1 = identity(x, skip_below_bytes=0)
    jax.block_until_ready(y1)
    assert y1.shape == x.shape and y1.dtype == x.dtype
    assert bool(jnp.all(y1 == x))

    # Materialized-copy path: direct HBM->HBM async DMA.
    y2 = identity(x, materialize=True, skip_below_bytes=0)
    jax.block_until_ready(y2)
    assert y2.shape == x.shape and y2.dtype == x.dtype
    assert bool(jnp.all(y2 == x))

    # Aliased path under jit with donation: output buffer == donated input
    # buffer, i.e. Identity costs zero HBM traffic.
    donated_identity = jax.jit(
        lambda a: identity(a, skip_below_bytes=0), donate_argnums=0)
    x_copy = x + 0.0                               # fresh buffer we can donate
    with warnings.catch_warnings():
        warnings.simplefilter("ignore")            # silence any donation notes
        y3 = donated_identity(x_copy)
    jax.block_until_ready(y3)
    assert y3.shape == x.shape and y3.dtype == x.dtype
    assert bool(jnp.all(y3 == x))

    print("KERNEL_OK")
</pallas_src>

<mosaic_0001>
module attributes {stable_mosaic.version = 11 : i64} {
  func.func @_alias_kernel(%arg0: memref<2x4x16x16xf32, #tpu.memory_space<any>>, %arg1: memref<2x4x16x16xf32, #tpu.memory_space<any>>) attributes {dimension_semantics = [], scalar_prefetch = 0 : i64, scratch_operands = 0 : i64, tpu.core_type = #tpu.core_type<tc>} {
    return
  }
}

</mosaic_0001>

<llo_original>
// kernel: tpu_custom_call.1
$region0: #{tpu_custom_call.1}
  #allocation0 [shape = 'u32[]', space=smem, size = 0x4, offset = 0x4, fixed_abs, tag = 'smem constant byte address 0x4 - core index']
  #allocation1 [shape = 'u32[72,128]{1,0:T(1,128)}', space=vmem, size = 0x9000, scoped, tag = 'internal scratch']
  %s0 = inlined_call_operand.hbm [shape: f32[2,4,16,16], index: 0, kind: input, shape index: {}, may-alias: {0,1}]
  %s1 = inlined_call_operand.hbm [shape: f32[2,4,16,16], index: 1, kind: output, shape index: {}, may-alias: {0,1}]
  %s2 = sld [smem:[#allocation0]]
  $region2: #{tpu_custom_call.1} parent=0
    _
  %s4 = ssub.s32 1, %s2
  %s5 = scalar_select 0, %s4, %s2

</llo_original>
